<compile_context>
chip_gen: v7x
topology: tpu7x:2x2x1
jax: 0.10.0
libtpu: 0.0.40
codegen_flags: <defaults>
</compile_context>

<pallas_src>
import jax
import jax.numpy as jnp
from jax.experimental import pallas as pl
from jax.experimental.pallas import tpu as pltpu

HIDDEN = 128
LANES = 128                     # TPU lane width: W2 padded to this in VMEM only
DEFAULT_TILE_B = 2048           # batch rows per grid step
VMEM_BUDGET_BYTES = 24 << 20    # conservative: fits default scoped VMEM everywhere


def pgn_kernel(x_ref, w1_ref, b1_ref, w2_ref, b2_ref, o_ref):
    # Layer 1: bf16 MXU matmul, f32 accumulation; bias + ReLU epilogue in f32 (VPU).
    h = jnp.dot(x_ref[...], w1_ref[...], preferred_element_type=jnp.float32)
    h = jnp.maximum(h + b1_ref[...], 0.0)          # b1 is (1, 128), broadcasts over rows
    # Layer 2: W2 is zero-padded to 128 lanes in VMEM (MXU cost identical), but
    # only the real n_actions columns are stored back to HBM (narrow writeback).
    out = jnp.dot(h.astype(w2_ref.dtype), w2_ref[...],
                  preferred_element_type=jnp.float32)
    n = o_ref.shape[-1]
    o_ref[...] = (out[:, :n] + b2_ref[...]).astype(o_ref.dtype)


def pgn_forward(x, w1, b1, w2, b2, *, tile_b=DEFAULT_TILE_B):
    """Forward pass. x:(B, input_size), w1:(input_size,128), b1:(1,128),
    w2:(128,n_actions), b2:(1,n_actions).  Returns (B, n_actions)."""
    B, input_size = x.shape
    hidden, n_actions = w2.shape
    assert hidden == HIDDEN
    out_dtype = x.dtype

    # ---- bf16 MXU operands (halves the dominant x HBM read stream). ----
    xc = x.astype(jnp.bfloat16)
    w1c = w1.astype(jnp.bfloat16)
    b1c = b1.astype(jnp.float32)
    b2c = b2.astype(jnp.float32)

    # ---- Pad W2 to a lane-dense 128-wide slab (VMEM only; output stays narrow). ----
    n_pad = LANES * pl.cdiv(n_actions, LANES)
    w2p = jnp.zeros((hidden, n_pad), jnp.bfloat16).at[:, :n_actions].set(
        w2.astype(jnp.bfloat16))

    # ---- Batch tile selection (multiple of 8 sublanes, ragged final block). ----
    b_aligned = 8 * pl.cdiv(B, 8)
    tile_b = min(tile_b, b_aligned)
    # Ensure >= 2 balanced grid steps whenever the batch allows it, so the
    # "parallel" batch axis actually spreads across both TensorCores on v7x.
    if b_aligned >= 16:
        tile_b = min(tile_b, 8 * pl.cdiv(pl.cdiv(B, 2), 8))
    # VMEM budget clamp: double-buffered x tile (bf16) + out tile (f32) per row.
    bytes_per_row = 2 * input_size * 2 + 2 * n_actions * 4
    tile_b = min(tile_b, max(8, (VMEM_BUDGET_BYTES // bytes_per_row) // 8 * 8))
    tile_b = max(8, 8 * (tile_b // 8))

    grid = (pl.cdiv(B, tile_b),)   # ragged last block: no jnp.pad copy of x

    flops = 2 * B * (input_size * hidden + hidden * n_pad)
    bytes_accessed = (xc.size * 2 + w1c.size * 2 + b1c.size * 4
                      + w2p.size * 2 + b2c.size * 4
                      + B * n_actions * jnp.dtype(out_dtype).itemsize)

    out = pl.pallas_call(
        pgn_kernel,
        out_shape=jax.ShapeDtypeStruct((B, n_actions), out_dtype),
        grid_spec=pltpu.PrefetchScalarGridSpec(
            num_scalar_prefetch=0,
            grid=grid,
            in_specs=[
                # Activations: one batch tile per grid step.
                # TODO(synk): on v5e, if DMA latency is still exposed at large B,
                # sweep pipeline_mode=pl.Buffered(3) on this spec.
                pl.BlockSpec((tile_b, input_size), lambda i: (i, 0)),
                # Weights/biases: constant block index -> stay resident in VMEM.
                pl.BlockSpec((input_size, hidden), lambda i: (0, 0)),
                pl.BlockSpec((1, hidden), lambda i: (0, 0)),
                pl.BlockSpec((hidden, n_pad), lambda i: (0, 0)),
                pl.BlockSpec((1, n_actions), lambda i: (0, 0)),
            ],
            out_specs=pl.BlockSpec((tile_b, n_actions), lambda i: (i, 0)),
        ),
        compiler_params=pltpu.CompilerParams(
            dimension_semantics=("parallel",),   # shard batch grid across v7x TCs
        ),
        cost_estimate=pl.CostEstimate(
            flops=flops, transcendentals=0, bytes_accessed=bytes_accessed),
    )(xc, w1c, b1c, w2p, b2c)

    return out


def init_params(key, input_size, n_actions, dtype=jnp.float32):
    """Deterministic init mimicking torch.nn.Linear (uniform +/- 1/sqrt(fan_in))."""
    k1, k2, k3, k4 = jax.random.split(key, 4)
    bound1 = 1.0 / jnp.sqrt(jnp.asarray(input_size, dtype))
    bound2 = 1.0 / jnp.sqrt(jnp.asarray(HIDDEN, dtype))
    w1 = jax.random.uniform(k1, (input_size, HIDDEN), dtype, -bound1, bound1)
    b1 = jax.random.uniform(k2, (1, HIDDEN), dtype, -bound1, bound1)
    w2 = jax.random.uniform(k3, (HIDDEN, n_actions), dtype, -bound2, bound2)
    b2 = jax.random.uniform(k4, (1, n_actions), dtype, -bound2, bound2)
    return w1, b1, w2, b2


if __name__ == "__main__":
    key = jax.random.PRNGKey(0)
    batch, input_size, n_actions = 8, 32, 4

    kx, kp = jax.random.split(key)
    x = jax.random.normal(kx, (batch, input_size), jnp.float32)
    w1, b1, w2, b2 = init_params(kp, input_size, n_actions)

    out = jax.block_until_ready(pgn_forward(x, w1, b1, w2, b2))

    # Pure-JAX f32 reference; bf16 MXU operands (f32 accumulation) => loose tol.
    ref = jnp.maximum(x @ w1 + b1, 0.0) @ w2 + b2
    assert out.shape == (batch, n_actions)
    assert jnp.allclose(out, ref, atol=3e-2, rtol=3e-2)

    # Also exercise the gridded, ragged-batch path (B not a tile multiple).
    big_b = 1030
    xb = jax.random.normal(kx, (big_b, input_size), jnp.float32)
    outb = jax.block_until_ready(pgn_forward(xb, w1, b1, w2, b2))
    refb = jnp.maximum(xb @ w1 + b1, 0.0) @ w2 + b2
    assert outb.shape == (big_b, n_actions)
    assert jnp.allclose(outb, refb, atol=3e-2, rtol=3e-2)

    print("KERNEL_OK")
</pallas_src>

<mosaic_0001>
module attributes {stable_mosaic.version = 11 : i64} {
  func.func @pgn_kernel(%arg0: i32, %arg1: memref<8x32xbf16, #tpu.memory_space<vmem>>, %arg2: memref<32x128xbf16, #tpu.memory_space<vmem>>, %arg3: memref<1x128xf32, #tpu.memory_space<vmem>>, %arg4: memref<128x128xbf16, #tpu.memory_space<vmem>>, %arg5: memref<1x4xf32, #tpu.memory_space<vmem>>, %arg6: memref<8x4xf32, #tpu.memory_space<vmem>>) attributes {dimension_semantics = [#tpu.dimension_semantics<parallel>], iteration_bounds = array<i64: 1>, scalar_prefetch = 0 : i64, scratch_operands = 0 : i64, tpu.core_type = #tpu.core_type<tc>, window_params = [{transform_indices = @transform_0, window_bounds = array<i64: 8, 32>}, {pipeline_mode = #tpu.pipeline_mode<synchronous>, transform_indices = @transform_1, window_bounds = array<i64: 32, 128>}, {pipeline_mode = #tpu.pipeline_mode<synchronous>, transform_indices = @transform_2, window_bounds = array<i64: 1, 128>}, {pipeline_mode = #tpu.pipeline_mode<synchronous>, transform_indices = @transform_3, window_bounds = array<i64: 128, 128>}, {pipeline_mode = #tpu.pipeline_mode<synchronous>, transform_indices = @transform_4, window_bounds = array<i64: 1, 4>}, {transform_indices = @transform_5, window_bounds = array<i64: 8, 4>}]} {
    %c0 = arith.constant 0 : index
    %c0_0 = arith.constant 0 : index
    %0 = vector.load %arg1[%c0, %c0_0] : memref<8x32xbf16, #tpu.memory_space<vmem>>, vector<8x32xbf16>
    %c0_1 = arith.constant 0 : index
    %c0_2 = arith.constant 0 : index
    %1 = vector.load %arg2[%c0_1, %c0_2] : memref<32x128xbf16, #tpu.memory_space<vmem>>, vector<32x128xbf16>
    %cst = arith.constant dense<0.000000e+00> : vector<8x128xf32>
    %2 = tpu.matmul %0, %1, %cst {dimension_numbers = #tpu.dot_dimension_numbers<[1], [0], [0], [1], [0, 0, 1, 1], [], []>} : vector<8x32xbf16>, vector<32x128xbf16>, vector<8x128xf32> -> vector<8x128xf32>
    %c0_3 = arith.constant 0 : index
    %c0_4 = arith.constant 0 : index
    %3 = vector.load %arg3[%c0_3, %c0_4] : memref<1x128xf32, #tpu.memory_space<vmem>>, vector<1x128xf32>
    %4 = vector.broadcast %3 : vector<1x128xf32> to vector<8x128xf32>
    %5 = arith.addf %2, %4 : vector<8x128xf32>
    %cst_5 = arith.constant 0.000000e+00 : f32
    %6 = vector.broadcast %cst_5 : f32 to vector<8x128xf32>
    %7 = arith.maximumf %5, %6 : vector<8x128xf32>
    %8 = arith.truncf %7 : vector<8x128xf32> to vector<8x128xbf16>
    %c0_6 = arith.constant 0 : index
    %c0_7 = arith.constant 0 : index
    %9 = vector.load %arg4[%c0_6, %c0_7] : memref<128x128xbf16, #tpu.memory_space<vmem>>, vector<128x128xbf16>
    %cst_8 = arith.constant dense<0.000000e+00> : vector<8x128xf32>
    %10 = tpu.matmul %8, %9, %cst_8 {dimension_numbers = #tpu.dot_dimension_numbers<[1], [0], [0], [1], [0, 0, 1, 1], [], []>} : vector<8x128xbf16>, vector<128x128xbf16>, vector<8x128xf32> -> vector<8x128xf32>
    %11 = vector.extract_strided_slice %10 {offsets = [0, 0], sizes = [8, 4], strides = [1, 1]} : vector<8x128xf32> to vector<8x4xf32>
    %c0_9 = arith.constant 0 : index
    %c0_10 = arith.constant 0 : index
    %12 = vector.load %arg5[%c0_9, %c0_10] : memref<1x4xf32, #tpu.memory_space<vmem>>, vector<1x4xf32>
    %13 = vector.broadcast %12 : vector<1x4xf32> to vector<8x4xf32>
    %14 = arith.addf %11, %13 : vector<8x4xf32>
    %c0_11 = arith.constant 0 : index
    %c0_12 = arith.constant 0 : index
    %15 = vector.load %arg6[%c0_11, %c0_12] : memref<8x4xf32, #tpu.memory_space<vmem>>, vector<8x4xf32>
    tpu.vector_store %arg6[%c0_11, %c0_12], %14 {strides = array<i32>} : memref<8x4xf32, #tpu.memory_space<vmem>>, vector<8x4xf32>,
    return
  }
  func.func @transform_0(%arg0: i32) -> (i32, i32) {
    %c0_i32 = arith.constant 0 : i32
    %c0_i32_0 = arith.constant 0 : i32
    return %arg0, %c0_i32 : i32, i32
  }
  func.func @transform_1(%arg0: i32) -> (i32, i32) {
    %c0_i32 = arith.constant 0 : i32
    %c0_i32_0 = arith.constant 0 : i32
    %c0_i32_1 = arith.constant 0 : i32
    return %c0_i32, %c0_i32_0 : i32, i32
  }
  func.func @transform_2(%arg0: i32) -> (i32, i32) {
    %c0_i32 = arith.constant 0 : i32
    %c0_i32_0 = arith.constant 0 : i32
    %c0_i32_1 = arith.constant 0 : i32
    return %c0_i32, %c0_i32_0 : i32, i32
  }
  func.func @transform_3(%arg0: i32) -> (i32, i32) {
    %c0_i32 = arith.constant 0 : i32
    %c0_i32_0 = arith.constant 0 : i32
    %c0_i32_1 = arith.constant 0 : i32
    return %c0_i32, %c0_i32_0 : i32, i32
  }
  func.func @transform_4(%arg0: i32) -> (i32, i32) {
    %c0_i32 = arith.constant 0 : i32
    %c0_i32_0 = arith.constant 0 : i32
    %c0_i32_1 = arith.constant 0 : i32
    return %c0_i32, %c0_i32_0 : i32, i32
  }
  func.func @transform_5(%arg0: i32) -> (i32, i32) {
    %c0_i32 = arith.constant 0 : i32
    %c0_i32_0 = arith.constant 0 : i32
    return %arg0, %c0_i32 : i32, i32
  }
}

</mosaic_0001>

<llo_original>
// kernel: tpu_custom_call.1
$region0: #{tpu_custom_call.1}
  #allocation0 [shape = 'u32[]', space=smem, size = 0x4, offset = 0x4, fixed_abs, tag = 'smem constant byte address 0x4 - core index']
  #allocation1 [shape = 'u32[144,128]{1,0:T(1,128)}', space=vmem, size = 0x12000, scoped, tag = 'internal scratch']
  %s0 = inlined_call_operand.hbm [shape: bf16[8,32], index: 0, kind: input, shape index: {}]
  %s1 = inlined_call_operand.hbm [shape: bf16[32,128], index: 1, kind: input, shape index: {}]
  %s2 = inlined_call_operand.vmem [shape: f32[1,128], index: 2, kind: input, shape index: {}]
  %s3 = inlined_call_operand.hbm [shape: bf16[128,128], index: 3, kind: input, shape index: {}]
  %s4 = inlined_call_operand.vmem [shape: f32[1,4], index: 4, kind: input, shape index: {}]
  %s5 = inlined_call_operand.vmem [shape: f32[8,4], index: 5, kind: output, shape index: {}]
  %s6 = sld [smem:[#allocation0]]
  $region42: #{tpu_custom_call.1} parent=0
    _
  %s8 = ssub.s32 1, %s6
  %s9 = scalar_select 0, %s8, %s6
  $region1: #{tpu_custom_call.1} parent=0
    #allocation2 [shape = 'u8[2048]{0}', space=vmem, size = 0x800, scoped, tag = 'input window, operand 0, single buffered']
    #allocation3 [shape = 's32[1]{0}', space=sflag, size = 0x4, scoped, tag = 'scoped memory for tpu_custom_call.1']
    #allocation4 [shape = 'u8[8192]{0}', space=vmem, size = 0x2000, scoped, tag = 'input window, operand 1, single buffered']
    #allocation5 [shape = 's32[1]{0}', space=sflag, size = 0x4, scoped, tag = 'scoped memory for tpu_custom_call.1']
    #allocation6 [shape = 'u8[32768]{0}', space=vmem, size = 0x8000, scoped, tag = 'input window, operand 3, single buffered']
    %10 = vsyncpa [#allocation3], 0
    %11 = vsyncpa [#allocation5], 0
    // Predicated region
    $region2: #{tpu_custom_call.1} parent=1 // pred_check
      _
    $region3: #{tpu_custom_call.1} parent=1 // pred_check_branch
      %13 = sbr.rel (0) target = $region5
    $region4: #{tpu_custom_call.1} parent=1 // pred_region
      %s15 = ssub.s32 64, 64
      %16 = vsyncadd [#allocation3], %s15
      %s18 = sshll.u32 [#allocation2], 4
      %s19 = int_to_ptr.vmem [resolvable:$true] %s18
      %21 = dma.hbm_to_vmem [thread:$0]  %s0, 64, %s19, [#allocation3]
    $region5: #{tpu_custom_call.1} parent=1 // pred_fallthru
      _
    // Predicated region
    $region6: #{tpu_custom_call.1} parent=1 // pred_check
      _
    $region7: #{tpu_custom_call.1} parent=1 // pred_check_branch
      %23 = sbr.rel (0) target = $region9
    $region8: #{tpu_custom_call.1} parent=1 // pred_region
      %s25 = ssub.s32 256, 256
      %26 = vsyncadd [#allocation5], %s25
      %s27 = sshll.u32 [#allocation4], 4
      %s28 = int_to_ptr.vmem [resolvable:$true] %s27
      %33 = dma.hbm_to_vmem [thread:$0]  %s1, 256, %s28, [#allocation5], 64, 64, 4
    $region9: #{tpu_custom_call.1} parent=1 // pred_fallthru
      _
    // Predicated region
    $region10: #{tpu_custom_call.1} parent=1 // pred_check
      _
    $region11: #{tpu_custom_call.1} parent=1 // pred_check_branch
      %35 = sbr.rel (0) target = $region13
    $region12: #{tpu_custom_call.1} parent=1 // pred_region
      _
    $region13: #{tpu_custom_call.1} parent=1 // pred_fallthru
      _
    // Predicated region
    $region14: #{tpu_custom_call.1} parent=1 // pred_check
      _
    $region15: #{tpu_custom_call.1} parent=1 // pred_check_branch
      %37 = sbr.rel (0) target = $region17
    $region16: #{tpu_custom_call.1} parent=1 // pred_region
      %s39 = ssub.s32 1024, 1024
      %40 = vsyncadd [#allocation5], %s39
      %s41 = sshll.u32 [#allocation6], 4
      %s42 = int_to_ptr.vmem [resolvable:$true] %s41
      %47 = dma.hbm_to_vmem [thread:$0]  %s3, 1024, %s42, [#allocation5], 64, 64, 4
    $region17: #{tpu_custom_call.1} parent=1 // pred_fallthru
      _
    // Predicated region
    $region18: #{tpu_custom_call.1} parent=1 // pred_check
      _
    $region19: #{tpu_custom_call.1} parent=1 // pred_check_branch
      %49 = sbr.rel (0) target = $region21
    $region20: #{tpu_custom_call.1} parent=1 // pred_region
      _
    $region21: #{tpu_custom_call.1} parent=1 // pred_fallthru
      _
    // Predicated region
    $region22: #{tpu_custom_call.1} parent=1 // pred_check
      _
    $region23: #{tpu_custom_call.1} parent=1 // pred_check_branch
      %51 = sbr.rel (0) target = $region25
    $region24: #{tpu_custom_call.1} parent=1 // pred_region
      %52 = dma.done [#allocation3], 64
    $region25: #{tpu_custom_call.1} parent=1 // pred_fallthru
      _
    // Predicated region
    $region26: #{tpu_custom_call.1} parent=1 // pred_check
      _
    $region27: #{tpu_custom_call.1} parent=1 // pred_check_branch
      %54 = sbr.rel (0) target = $region29
    $region28: #{tpu_custom_call.1} parent=1 // pred_region
      %55 = dma.done [#allocation5], 256
    $region29: #{tpu_custom_call.1} parent=1 // pred_fallthru
      _
    // Predicated region
    $region30: #{tpu_custom_call.1} parent=1 // pred_check
      _
    $region31: #{tpu_custom_call.1} parent=1 // pred_check_branch
      %57 = sbr.rel (0) target = $region33
    $region32: #{tpu_custom_call.1} parent=1 // pred_region
      %58 = dma.done [#allocation5], 1024
    $region33: #{tpu_custom_call.1} parent=1 // pred_fallthru
      _
    %v60 = vld [vmem:[#allocation2] sm:$0xf]
    %v61 = vld [vmem:[#allocation4] sm:$0xf]
    %v62 = vld [vmem:[#allocation4 + $0x4] sm:$0xf]
    %v63 = vld [vmem:[#allocation4 + $0x8] sm:$0xf]
    %v64 = vld [vmem:[#allocation4 + $0xc] sm:$0xf]
    %v65 = vld [vmem:[%s2] sm:$0x1]
    %v67 = vlaneseq
    %v68 = vshrl.u32 %v67, 7
    %v69 = vsub.s32 0, %v68
    %v70 = vrot.slane %v65, %v69
    %v76 = vunpack.c.l.b16 %v61
    %v77 = vunpack.c.l.b16 %v62
    %v78 = vunpack.c.l.b16 %v63
    %v79 = vunpack.c.l.b16 %v64
    %v80 = vpack.c.b16 %v77, %v76
    %v81 = vpack.c.b16 %v79, %v78
    %vm84 = vcmask 261120
    %v86 = vsel %vm84, %v60, 0
    %88 = vmatprep.subr.bf16.mxu0 0
    %89 = vmatpush1.bf16.msra.mxu0 %v80
    %90 = vmatprep.subr.bf16.mxu0 0
    %91 = vmatpush1.bf16.msra.mxu0 %v81
    %92 = vmatprep.subr.bf16.mxu0 0
    %93 = vmatpush1.bf16.msra.mxu0 0
    %94 = vmatprep.subr.bf16.mxu0 0
    %95 = vmatpush1.bf16.msra.mxu0 0
    %96 = vmatprep.subr.bf16.mxu0 0
    %97 = vmatpush1.bf16.msra.mxu0 0
    %98 = vmatprep.subr.bf16.mxu0 0
    %99 = vmatpush1.bf16.msra.mxu0 0
    %100 = vmatprep.subr.bf16.mxu0 0
    %101 = vmatpush1.bf16.msra.mxu0 0
    %102 = vmatprep.subr.bf16.mxu0 0
    %103 = vmatpush1.bf16.msra.mxu0 0
    %104 = vmatprep.subr.bf16.mxu0 0
    %105 = vmatpush1.bf16.msra.mxu0 0
    %106 = vmatprep.subr.bf16.mxu0 0
    %107 = vmatpush1.bf16.msra.mxu0 0
    %108 = vmatprep.subr.bf16.mxu0 0
    %109 = vmatpush1.bf16.msra.mxu0 0
    %110 = vmatprep.subr.bf16.mxu0 0
    %111 = vmatpush1.bf16.msra.mxu0 0
    %112 = vmatprep.subr.bf16.mxu0 0
    %113 = vmatpush1.bf16.msra.mxu0 0
    %114 = vmatprep.subr.bf16.mxu0 0
    %115 = vmatpush1.bf16.msra.mxu0 0
    %116 = vmatprep.subr.bf16.mxu0 0
    %117 = vmatpush1.bf16.msra.mxu0 0
    %118 = vmatprep.subr.bf16.mxu0 0
    %119 = vmatpush1.bf16.msra.mxu0 0
    %120 = vmatprep.mubr.bf16.mxu0 0
    %121 = vmatmul.mubr.bf16.gmra.mrb[0].mxu0 %v86
    %v122 = vpop.f32.mrb[0].mxu0
    %v123 = vadd.f32 %v70, %v122
    %v124 = vpop.f32.mrb[0].mxu0
    %v125 = vpop.f32.mrb[0].mxu0
    %v126 = vpop.f32.mrb[0].mxu0
    %127 = vdwg.mxu0
    %v128 = vmax.f32 %v123, 0.0
    %v129 = vpack.c.bf16 %v128, %v128
    %v130 = vld [vmem:[#allocation6] sm:$0xf]
    %v131 = vld [vmem:[#allocation6 + $0x4] sm:$0xf]
    %v132 = vld [vmem:[#allocation6 + $0x8] sm:$0xf]
    %v133 = vld [vmem:[#allocation6 + $0xc] sm:$0xf]
    %v134 = vld [vmem:[#allocation6 + $0x10] sm:$0xf]
    %v135 = vld [vmem:[#allocation6 + $0x14] sm:$0xf]
    %v136 = vld [vmem:[#allocation6 + $0x18] sm:$0xf]
    %v137 = vld [vmem:[#allocation6 + $0x1c] sm:$0xf]
    %v138 = vld [vmem:[#allocation6 + $0x20] sm:$0xf]
    %v139 = vld [vmem:[#allocation6 + $0x24] sm:$0xf]
    %v140 = vld [vmem:[#allocation6 + $0x28] sm:$0xf]
    %v141 = vld [vmem:[#allocation6 + $0x2c] sm:$0xf]
    %v142 = vld [vmem:[#allocation6 + $0x30] sm:$0xf]
    %v143 = vld [vmem:[#allocation6 + $0x34] sm:$0xf]
    %v144 = vld [vmem:[#allocation6 + $0x38] sm:$0xf]
    %v145 = vld [vmem:[#allocation6 + $0x3c] sm:$0xf]
    %v162 = vunpack.c.l.b16 %v130
    %v163 = vunpack.c.l.b16 %v131
    %v164 = vunpack.c.l.b16 %v132
    %v165 = vunpack.c.l.b16 %v133
    %v166 = vunpack.c.l.b16 %v134
    %v167 = vunpack.c.l.b16 %v135
    %v168 = vunpack.c.l.b16 %v136
    %v169 = vunpack.c.l.b16 %v137
    %v170 = vunpack.c.l.b16 %v138
    %v171 = vunpack.c.l.b16 %v139
    %v172 = vunpack.c.l.b16 %v140
    %v173 = vunpack.c.l.b16 %v141
    %v174 = vunpack.c.l.b16 %v142
    %v175 = vunpack.c.l.b16 %v143
    %v176 = vunpack.c.l.b16 %v144
    %v177 = vunpack.c.l.b16 %v145
    %v178 = vpack.c.b16 %v163, %v162
    %v179 = vpack.c.b16 %v165, %v164
    %v180 = vpack.c.b16 %v167, %v166
    %v181 = vpack.c.b16 %v169, %v168
    %v182 = vpack.c.b16 %v171, %v170
    %v183 = vpack.c.b16 %v173, %v172
    %v184 = vpack.c.b16 %v175, %v174
    %v185 = vpack.c.b16 %v177, %v176
    %194 = vmatprep.subr.bf16.mxu0 0
    %195 = vmatpush1.bf16.msra.mxu0 %v178
    %196 = vmatprep.subr.bf16.mxu0 0
    %197 = vmatpush1.bf16.msra.mxu0 %v179
    %198 = vmatprep.subr.bf16.mxu0 0
    %199 = vmatpush1.bf16.msra.mxu0 %v180
    %200 = vmatprep.subr.bf16.mxu0 0
    %201 = vmatpush1.bf16.msra.mxu0 %v181
    %202 = vmatprep.subr.bf16.mxu0 0
    %203 = vmatpush1.bf16.msra.mxu0 %v182
    %204 = vmatprep.subr.bf16.mxu0 0
    %205 = vmatpush1.bf16.msra.mxu0 %v183
    %206 = vmatprep.subr.bf16.mxu0 0
    %207 = vmatpush1.bf16.msra.mxu0 %v184
    %208 = vmatprep.subr.bf16.mxu0 0
    %209 = vmatpush1.bf16.msra.mxu0 %v185
    %210 = vmatprep.subr.bf16.mxu0 0
    %211 = vmatpush1.bf16.msra.mxu0 0
    %212 = vmatprep.subr.bf16.mxu0 0
    %213 = vmatpush1.bf16.msra.mxu0 0
    %214 = vmatprep.subr.bf16.mxu0 0
    %215 = vmatpush1.bf16.msra.mxu0 0
    %216 = vmatprep.subr.bf16.mxu0 0
    %217 = vmatpush1.bf16.msra.mxu0 0
    %218 = vmatprep.subr.bf16.mxu0 0
    %219 = vmatpush1.bf16.msra.mxu0 0
    %220 = vmatprep.subr.bf16.mxu0 0
    %221 = vmatpush1.bf16.msra.mxu0 0
    %222 = vmatprep.subr.bf16.mxu0 0
    %223 = vmatpush1.bf16.msra.mxu0 0
    %224 = vmatprep.subr.bf16.mxu0 0
    %225 = vmatpush1.bf16.msra.mxu0 0
    %226 = vmatprep.mubr.bf16.mxu0 0
    %227 = vmatmul.mubr.bf16.gmra.mrb[0].mxu0 %v129
    %v228 = vpop.f32.mrb[0].mxu0
    %v229 = vadd.f32 0.0, %v228
    %v230 = vpop.f32.mrb[0].mxu0
    %v231 = vpop.f32.mrb[0].mxu0
    %v232 = vpop.f32.mrb[0].mxu0
    %233 = vdwg.mxu0
    %v234 = vld [vmem:[%s4] sm:$0x1]
    %v236 = vlaneseq
    %v237 = vshrl.u32 %v236, 7
    %v238 = vsub.s32 0, %v237
    %v239 = vrot.slane %v234, %v238
    %v241 = vadd.f32 %v229, %v239
    %vm242 = vcmask 31744
    %243 = vst.msk [vmem:[%s5] sm:$0xff] %vm242, %v241
    // Predicated region
    $region34: #{tpu_custom_call.1} parent=1 // pred_check
      _
    $region35: #{tpu_custom_call.1} parent=1 // pred_check_branch
      %245 = sbr.rel (0) target = $region37
    $region36: #{tpu_custom_call.1} parent=1 // pred_region
      _
    $region37: #{tpu_custom_call.1} parent=1 // pred_fallthru
      _
    // Predicated region
    $region38: #{tpu_custom_call.1} parent=1 // pred_check
      _
    $region39: #{tpu_custom_call.1} parent=1 // pred_check_branch
      %247 = sbr.rel (0) target = $region41
    $region40: #{tpu_custom_call.1} parent=1 // pred_region
      _
    $region41: #{tpu_custom_call.1} parent=1 // pred_fallthru
      _
    %248 = vsyncpa [#allocation3], 1
    %249 = vsyncpa [#allocation5], 1

</llo_original>
